<compile_context>
chip_gen: v5e
topology: v5e:2x2
jax: 0.10.0
libtpu: 0.0.40
codegen_flags: <defaults>
</compile_context>

<pallas_src>
import jax
import jax.numpy as jnp
from jax.experimental import pallas as pl
from jax.experimental.pallas import tpu as pltpu


def _relu_kernel(x_ref, o_ref):
    o_ref[...] = jnp.maximum(x_ref[...], 0)


_LANE_CANDIDATES = (4096, 2048, 1024, 512, 256, 128)


def _vmem_capacity_bytes() -> int:
    """Best-effort VMEM capacity query; conservative (v7x-class) fallback."""
    try:
        info = pltpu.get_tpu_info()
        cap = getattr(info, "vmem_capacity_bytes", None)
        if cap:
            return int(cap)
    except Exception:
        pass
    return 64 << 20


def andhra_forward(
    x: jax.Array,
    *,
    min_pallas_bytes: int = 1 << 20,
    target_block_bytes: int | None = None,
    vmem_limit_bytes: int | None = None,
):
    """x: any-shape float array (module used NCHW). Returns (relu(x), relu(x))."""
    dtype = x.dtype
    itemsize = jnp.dtype(dtype).itemsize
    total = int(x.size)
    nbytes = total * itemsize

    # Fast path for tiny inputs, and fallback when a lane-dense 2D view is
    # impossible (element count not a multiple of 128). Plain XLA ReLU is also
    # 1R+1W; this avoids pallas_call dispatch overhead and any padding copies.
    if total == 0 or nbytes < min_pallas_bytes or total % 128 != 0:
        y = jnp.maximum(x, 0)
        return y, y

    # Widest lane (multiple of 128) dividing the element count -> pure reshape
    # (no jnp.pad, no tail slice) and full-width unmasked vector stores.
    lane = 128
    for cand in _LANE_CANDIDATES:
        if total % cand == 0:
            lane = cand
            break
    rows = total // lane

    # dtype-aware sublane granularity: f32 -> 8, bf16 -> 16, int8/fp8 -> 32.
    sublane = max(8, 32 // itemsize)

    # Per-generation block-byte target and VMEM limit.
    if target_block_bytes is None or vmem_limit_bytes is None:
        vmem_cap = _vmem_capacity_bytes()
        if vmem_cap >= (96 << 20):   # v5e / v6e: 128 MiB VMEM -> bigger blocks
            tbb, vlb = 8 << 20, 56 << 20
        else:                        # v7x-class: 64 MiB VMEM
            tbb, vlb = 4 << 20, 40 << 20
        target_block_bytes = target_block_bytes or tbb
        vmem_limit_bytes = vmem_limit_bytes or vlb

    # Byte-targeted row tile (constant DMA size across dtypes).
    target_rows = max(sublane, target_block_bytes // (lane * itemsize))
    if rows <= sublane:
        block_rows = rows                                 # block dim == full array dim: allowed
    else:
        block_rows = min(target_rows, rows)
        block_rows = (block_rows // sublane) * sublane    # keep sublane-aligned (>= sublane here)

    x2d = x.reshape(rows, lane)                           # relayout-free view
    grid = (pl.cdiv(rows, block_rows),)                   # ragged tail block: Pallas masks stores
    spec = pl.BlockSpec((block_rows, lane), lambda i: (i, 0))

    y2d = pl.pallas_call(
        _relu_kernel,
        out_shape=jax.ShapeDtypeStruct((rows, lane), dtype),
        grid=grid,
        in_specs=[spec],
        out_specs=spec,
        compiler_params=pltpu.CompilerParams(
            dimension_semantics=("parallel",),  # lets v7x shard the row grid over its 2 TCs
            vmem_limit_bytes=vmem_limit_bytes,
        ),
    )(x2d)

    y = y2d.reshape(x.shape)
    # Two non-inplace ReLU branches of one input are bit-identical: return one buffer twice.
    return y, y


if __name__ == "__main__":
    key = jax.random.PRNGKey(0)
    k1, k2, k3 = jax.random.split(key, 3)

    # Primary: small NCHW input consistent with the module; force the Pallas path
    # (default fast-path threshold would otherwise absorb this 8 KiB tensor).
    x = jax.random.normal(k1, (2, 4, 16, 16), dtype=jnp.float32)
    y1, y2 = andhra_forward(x, min_pallas_bytes=0)
    jax.block_until_ready((y1, y2))
    ref = jnp.maximum(x, 0.0)
    assert y1.shape == x.shape and y2.shape == x.shape
    assert y1.dtype == x.dtype and y2.dtype == x.dtype
    assert jnp.array_equal(y1, ref) and jnp.array_equal(y2, ref)

    # Ragged grid check (rows=10, block_rows=8): exercises the masked tail block.
    xr = jax.random.normal(k2, (2, 4, 40, 128), dtype=jnp.float32)
    r1, r2 = andhra_forward(xr, min_pallas_bytes=0)
    jax.block_until_ready((r1, r2))
    ref_r = jnp.maximum(xr, 0.0)
    assert jnp.array_equal(r1, ref_r) and jnp.array_equal(r2, ref_r)

    # Small / non-128-divisible input: fast path (no pallas_call, no padding copies).
    xs = jax.random.normal(k3, (2, 3, 5, 7), dtype=jnp.float32)
    s1, s2 = andhra_forward(xs)
    jax.block_until_ready((s1, s2))
    ref_s = jnp.maximum(xs, 0.0)
    assert jnp.array_equal(s1, ref_s) and jnp.array_equal(s2, ref_s)

    print("KERNEL_OK")
</pallas_src>

<mosaic_0001>
module attributes {stable_mosaic.version = 11 : i64} {
  func.func @_relu_kernel(%arg0: i32, %arg1: memref<1x2048xf32, #tpu.memory_space<vmem>>, %arg2: memref<1x2048xf32, #tpu.memory_space<vmem>>) attributes {dimension_semantics = [#tpu.dimension_semantics<parallel>], iteration_bounds = array<i64: 1>, scalar_prefetch = 0 : i64, scratch_operands = 0 : i64, tpu.core_type = #tpu.core_type<tc>, window_params = [{transform_indices = @transform_0, window_bounds = array<i64: 1, 2048>}, {transform_indices = @transform_1, window_bounds = array<i64: 1, 2048>}]} {
    %c0 = arith.constant 0 : index
    %c0_0 = arith.constant 0 : index
    %0 = vector.load %arg1[%c0, %c0_0] : memref<1x2048xf32, #tpu.memory_space<vmem>>, vector<1x2048xf32>
    %cst = arith.constant 0.000000e+00 : f32
    %1 = vector.broadcast %cst : f32 to vector<1x2048xf32>
    %2 = arith.maximumf %0, %1 : vector<1x2048xf32>
    %c0_1 = arith.constant 0 : index
    %c0_2 = arith.constant 0 : index
    %3 = vector.load %arg2[%c0_1, %c0_2] : memref<1x2048xf32, #tpu.memory_space<vmem>>, vector<1x2048xf32>
    tpu.vector_store %arg2[%c0_1, %c0_2], %2 {strides = array<i32>} : memref<1x2048xf32, #tpu.memory_space<vmem>>, vector<1x2048xf32>,
    return
  }
  func.func @transform_0(%arg0: i32) -> (i32, i32) {
    %c0_i32 = arith.constant 0 : i32
    %c0_i32_0 = arith.constant 0 : i32
    return %arg0, %c0_i32 : i32, i32
  }
  func.func @transform_1(%arg0: i32) -> (i32, i32) {
    %c0_i32 = arith.constant 0 : i32
    %c0_i32_0 = arith.constant 0 : i32
    return %arg0, %c0_i32 : i32, i32
  }
}

</mosaic_0001>

<llo_original>
// kernel: tpu_custom_call.1
$region0: #{tpu_custom_call.1}
  #allocation0 [shape = 'u32[]', space=smem, size = 0x4, offset = 0x4, fixed_abs, tag = 'smem constant byte address 0x4 - core index']
  #allocation1 [shape = 'u32[72,128]{1,0:T(1,128)}', space=vmem, size = 0x9000, scoped, tag = 'internal scratch']
  %s0 = inlined_call_operand.hbm [shape: f32[1,2048], index: 0, kind: input, shape index: {}]
  %s1 = inlined_call_operand.hbm [shape: f32[1,2048], index: 1, kind: output, shape index: {}]
  %s2 = sld [smem:[#allocation0]]
  $region18: #{tpu_custom_call.1} parent=0
    _
  %s4 = ssub.s32 1, %s2
  %s5 = scalar_select 0, %s4, %s2
  $region1: #{tpu_custom_call.1} parent=0
    #allocation2 [shape = 'u8[8192]{0}', space=vmem, size = 0x2000, scoped, tag = 'input window, operand 0, single buffered']
    #allocation3 [shape = 's32[1]{0}', space=sflag, size = 0x4, scoped, tag = 'scoped memory for tpu_custom_call.1']
    #allocation4 [shape = 's32[1]{0}', space=sflag, size = 0x4, scoped, tag = 'scoped memory for tpu_custom_call.1']
    #allocation5 [shape = 'u8[8192]{0}', space=vmem, size = 0x2000, scoped, tag = 'output window, operand 0, single buffered']
    %6 = vsyncpa [#allocation3], 0
    %7 = vsyncpa [#allocation4], 0
    // Predicated region
    $region2: #{tpu_custom_call.1} parent=1 // pred_check
      _
    $region3: #{tpu_custom_call.1} parent=1 // pred_check_branch
      %9 = sbr.rel (0) target = $region5
    $region4: #{tpu_custom_call.1} parent=1 // pred_region
      %11 = vsyncadd [#allocation3], 0
      %s13 = sshll.u32 %s0, 4
      %s14 = int_to_ptr.hbm [resolvable:$true] %s13
      %s15 = sshll.u32 [#allocation2], 4
      %s16 = int_to_ptr.vmem [resolvable:$true] %s15
      %18 = dma.hbm_to_vmem [thread:$0]  %s14, 256, %s16, [#allocation3]
    $region5: #{tpu_custom_call.1} parent=1 // pred_fallthru
      _
    // Predicated region
    $region6: #{tpu_custom_call.1} parent=1 // pred_check
      _
    $region7: #{tpu_custom_call.1} parent=1 // pred_check_branch
      %20 = sbr.rel (0) target = $region9
    $region8: #{tpu_custom_call.1} parent=1 // pred_region
      %22 = dma.done [#allocation3], 256
    $region9: #{tpu_custom_call.1} parent=1 // pred_fallthru
      _
    %v23 = vld [vmem:[#allocation2] sm:$0xff]
    %v24 = vld [vmem:[#allocation2 + $0x8] sm:$0xff]
    %v25 = vmax.f32 %v23, 0.0
    %v26 = vmax.f32 %v24, 0.0
    %27 = vst [vmem:[#allocation5] sm:$0xff] %v25
    %28 = vst [vmem:[#allocation5 + $0x8] sm:$0xff] %v26
    // Predicated region
    $region10: #{tpu_custom_call.1} parent=1 // pred_check
      _
    $region11: #{tpu_custom_call.1} parent=1 // pred_check_branch
      %30 = sbr.rel (0) target = $region13
    $region12: #{tpu_custom_call.1} parent=1 // pred_region
      %32 = vsyncadd [#allocation4], 0
      %s34 = sshll.u32 [#allocation5], 4
      %s35 = int_to_ptr.vmem [resolvable:$true] %s34
      %s36 = sshll.u32 %s1, 4
      %s37 = int_to_ptr.hbm [resolvable:$true] %s36
      %39 = dma.vmem_to_hbm [thread:$0]  %s35, 256, %s37, [#allocation4]
    $region13: #{tpu_custom_call.1} parent=1 // pred_fallthru
      _
    // Predicated region
    $region14: #{tpu_custom_call.1} parent=1 // pred_check
      _
    $region15: #{tpu_custom_call.1} parent=1 // pred_check_branch
      %41 = sbr.rel (0) target = $region17
    $region16: #{tpu_custom_call.1} parent=1 // pred_region
      %43 = dma.done [#allocation4], 256
    $region17: #{tpu_custom_call.1} parent=1 // pred_fallthru
      _
    %44 = vsyncpa [#allocation3], 1
    %45 = vsyncpa [#allocation4], 1

</llo_original>
